<compile_context>
chip_gen: v6e
topology: v6e:2x2x1
jax: 0.10.0
libtpu: 0.0.40
codegen_flags: <defaults>
</compile_context>

<pallas_src>
import functools

import jax
import jax.numpy as jnp
import numpy as np
from jax import lax
from jax.experimental import pallas as pl
from jax.experimental.pallas import tpu as pltpu


# --------------------------------------------------------------------------
# helpers
# --------------------------------------------------------------------------
def _round_up(x, m):
    return ((x + m - 1) // m) * m


def _vmem_capacity_bytes():
    try:
        return int(pltpu.get_tpu_info().vmem_capacity_bytes)
    except Exception:
        return 64 * 1024 * 1024  # conservative fallback (v7x per-core VMEM)


# --------------------------------------------------------------------------
# Phase 1: sequence-mean pooling (AdaptiveAvgPool1d(1) over the S axis)
# --------------------------------------------------------------------------
def _pool_kernel(hs_ref, pooled_ref, acc_ref, *, inv_s, s_tail):
    si = pl.program_id(0)
    last = pl.num_programs(0) - 1

    @pl.when(si == 0)
    def _():
        acc_ref[...] = jnp.zeros_like(acc_ref)

    x = hs_ref[...].astype(jnp.float32)        # [ts, B, H]

    if s_tail:  # static: last S-chunk is padded; zero the padded rows
        @pl.when(si != last)
        def _():
            acc_ref[...] += jnp.sum(x, axis=0)

        @pl.when(si == last)
        def _():
            rows = lax.broadcasted_iota(jnp.int32, x.shape, 0)
            acc_ref[...] += jnp.sum(jnp.where(rows < s_tail, x, 0.0), axis=0)
    else:
        acc_ref[...] += jnp.sum(x, axis=0)

    @pl.when(si == last)
    def _():
        # single cast to the classifier-weight dtype (bf16 or f32)
        pooled_ref[...] = (acc_ref[...] * inv_s).astype(pooled_ref.dtype)


# --------------------------------------------------------------------------
# Phase 2: V-streamed classifier + online vocab cross-entropy (per-split partials)
# --------------------------------------------------------------------------
def _cls_loss_kernel(pooled_ref, w_ref, lbl_ref, m_out, l_out, t_out,
                     m_ref, l_ref, t_ref, *,
                     tv, tiles_per_split, v_total, needs_mask):
    ci = pl.program_id(0)          # split (TensorCore) index
    vi = pl.program_id(1)          # V-tile index within the split
    last_v = pl.num_programs(1) - 1

    @pl.when(vi == 0)
    def _():
        m_ref[...] = jnp.full_like(m_ref, -jnp.inf)
        l_ref[...] = jnp.zeros_like(l_ref)
        t_ref[...] = jnp.zeros_like(t_ref)

    w_tile = w_ref[...]            # [tv, H], native dtype (bf16 ok)
    pooled = pooled_ref[...]       # [B, H], already in the weight dtype

    # NT-form matmul: contract H against H; no in-kernel weight transpose.
    logits = lax.dot_general(
        pooled, w_tile,
        dimension_numbers=(((1,), (1,)), ((), ())),
        preferred_element_type=jnp.float32)                    # [B, tv] f32

    ids = ((ci * tiles_per_split + vi) * tv
           + lax.broadcasted_iota(jnp.int32, logits.shape, 1))  # global vocab ids
    if needs_mask:  # static: only emitted when the last V-tile is padded
        logits = jnp.where(ids < v_total, logits, -jnp.inf)

    # ---- online logsumexp update ----
    m_prev = m_ref[...]
    m_new = jnp.maximum(m_prev, jnp.max(logits, axis=-1, keepdims=True))
    l_ref[...] = (l_ref[...] * jnp.exp(m_prev - m_new)
                  + jnp.sum(jnp.exp(logits - m_new), axis=-1, keepdims=True))
    m_ref[...] = m_new

    # ---- fused target-logit extraction for this vocab tile ----
    hit = ids == lbl_ref[...]                                   # [B, tv]
    t_ref[...] += jnp.sum(jnp.where(hit, logits, 0.0), axis=-1, keepdims=True)

    @pl.when(vi == last_v)
    def _():
        m_out[...] = m_ref[...]
        l_out[...] = l_ref[...]
        t_out[...] = t_ref[...]


# --------------------------------------------------------------------------
# Host-side wrapper
# --------------------------------------------------------------------------
def swin_cls_forward(hidden_states, classifier_weight, labels, *, ts=None, tv=None):
    """hidden_states: [S, B, H]; classifier_weight: [V, H]; labels: [B, 1] int.
    Returns per-example (un-reduced) cross-entropy loss of shape [B, 1] float32."""
    S, B, H = hidden_states.shape
    V, H2 = classifier_weight.shape
    assert H2 == H
    assert labels.shape == (B, 1)

    hs_itemsize = jnp.dtype(hidden_states.dtype).itemsize
    w_itemsize = jnp.dtype(classifier_weight.dtype).itemsize
    pooled_dtype = classifier_weight.dtype
    p_itemsize = jnp.dtype(pooled_dtype).itemsize

    vmem_cap = _vmem_capacity_bytes()
    # ~24 MiB of streamed, double-buffered data on 128 MiB parts (v5e/v6e),
    # ~16 MiB on v7x's 64 MiB VMEM.
    stream_budget = min(24 << 20, vmem_cap // 4)

    # ---------------- phase 1: S-chunked mean pooling -------------------------
    if ts is None:
        cap_ts = max(8, stream_budget // (2 * B * H * hs_itemsize))
        ts = max(8, (min(cap_ts, 1024) // 8) * 8)
    ts = max(1, min(ts, S))
    num_s = pl.cdiv(S, ts)
    s_tail = S - (num_s - 1) * ts
    s_tail = 0 if s_tail == ts else s_tail           # 0 => no tail masking needed

    p1_vmem = int(min(vmem_cap - (4 << 20),
                      2 * ts * B * H * hs_itemsize + 3 * B * H * 4 + (8 << 20)))

    pooled = pl.pallas_call(
        functools.partial(_pool_kernel, inv_s=1.0 / S, s_tail=s_tail),
        out_shape=jax.ShapeDtypeStruct((B, H), pooled_dtype),
        grid=(num_s,),
        in_specs=[pl.BlockSpec((ts, B, H), lambda s: (s, 0, 0))],
        out_specs=pl.BlockSpec((B, H), lambda s: (0, 0)),
        scratch_shapes=[pltpu.VMEM((B, H), jnp.float32)],
        compiler_params=pltpu.CompilerParams(
            dimension_semantics=("arbitrary",),
            vmem_limit_bytes=p1_vmem),
        cost_estimate=pl.CostEstimate(
            flops=S * B * H, transcendentals=0,
            bytes_accessed=S * B * H * hs_itemsize + B * H * p_itemsize),
    )(hidden_states)

    # ---------------- phase 2: V-streamed classifier + online CE --------------
    if tv is None:
        cap_tv = max(8, stream_budget // (2 * H * w_itemsize))  # 2-deep pipeline
        want = _round_up(V, 256)
        tv = 8
        for align in (256, 128, 8):                   # prefer 256-wide (v6e/v7x MXU)
            cand = (min(cap_tv, want) // align) * align
            if cand >= align:
                tv = cand
                break
    tv = max(8, min(tv, _round_up(V, 8)))
    num_tiles = pl.cdiv(V, tv)
    needs_mask = (num_tiles * tv != V)

    # Split the V stream across two TensorCores (v7x megacore). On 1-TC parts the
    # leading 'parallel' axis runs serially and costs one extra [B,1] row + combine.
    num_splits = 2 if (num_tiles >= 2 and num_tiles % 2 == 0) else 1
    tiles_per_split = num_tiles // num_splits

    p2_vmem = int(min(vmem_cap - (4 << 20),
                      2 * tv * H * w_itemsize + 2 * B * H * p_itemsize + (8 << 20)))

    labels_i32 = labels.astype(jnp.int32)

    m_p, l_p, t_p = pl.pallas_call(
        functools.partial(_cls_loss_kernel, tv=tv,
                          tiles_per_split=tiles_per_split,
                          v_total=V, needs_mask=needs_mask),
        out_shape=(jax.ShapeDtypeStruct((num_splits, B, 1), jnp.float32),
                   jax.ShapeDtypeStruct((num_splits, B, 1), jnp.float32),
                   jax.ShapeDtypeStruct((num_splits, B, 1), jnp.float32)),
        grid=(num_splits, tiles_per_split),
        in_specs=[
            pl.BlockSpec((B, H), lambda c, v: (0, 0)),                    # pooled, resident
            pl.BlockSpec((tv, H), lambda c, v: (c * tiles_per_split + v, 0)),  # weight stream
            pl.BlockSpec((B, 1), lambda c, v: (0, 0)),                    # labels, resident
        ],
        out_specs=(
            pl.BlockSpec((None, B, 1), lambda c, v: (c, 0, 0)),           # m partial
            pl.BlockSpec((None, B, 1), lambda c, v: (c, 0, 0)),           # l partial
            pl.BlockSpec((None, B, 1), lambda c, v: (c, 0, 0)),           # target partial
        ),
        scratch_shapes=[pltpu.VMEM((B, 1), jnp.float32)] * 3,             # m, l, target
        compiler_params=pltpu.CompilerParams(
            dimension_semantics=("parallel", "arbitrary"),
            vmem_limit_bytes=p2_vmem),
        cost_estimate=pl.CostEstimate(
            flops=2 * B * H * V, transcendentals=B * V,
            bytes_accessed=V * H * w_itemsize + B * H * p_itemsize + B * 8),
    )(pooled, classifier_weight, labels_i32)

    # ---------------- tiny cross-split LSE combine epilogue -------------------
    m = m_p[..., 0]                                   # [num_splits, B]
    l = l_p[..., 0]
    t = t_p[..., 0]
    m_all = jnp.max(m, axis=0)                        # [B]
    lse = m_all + jnp.log(jnp.sum(l * jnp.exp(m - m_all), axis=0))
    loss = lse - jnp.sum(t, axis=0)
    return loss[:, None].astype(jnp.float32)          # [B, 1]


# --------------------------------------------------------------------------
# Pure-JAX reference (single TP rank semantics of the PyTorch module)
# --------------------------------------------------------------------------
def reference_forward(hidden_states, classifier_weight, labels):
    pooled = jnp.mean(hidden_states.astype(jnp.float32), axis=0)         # [B, H]
    logits = jnp.dot(pooled, classifier_weight.astype(jnp.float32).T,
                     precision=jax.lax.Precision.HIGHEST)                # [B, V]
    logz = jax.scipy.special.logsumexp(logits, axis=-1)                  # [B]
    tgt = jnp.take_along_axis(logits, labels.astype(jnp.int32), axis=-1)[:, 0]
    return (logz - tgt)[:, None]                                         # [B, 1]


if __name__ == "__main__":
    # Deliberately non-divisible shapes to exercise the tail-masking paths:
    # S=50 (ts=16 -> 4 chunks, 2-row tail), V=1000 (tv=256 -> 4 tiles, masked
    # last tile, 2-way 'parallel' V split with partial-LSE combine).
    S, B, H, V = 50, 8, 128, 1000

    key = jax.random.PRNGKey(0)
    k_hs, k_w, k_lbl = jax.random.split(key, 3)

    hidden_states = jax.random.normal(k_hs, (S, B, H), dtype=jnp.float32)
    classifier_weight = (jax.random.normal(k_w, (V, H), dtype=jnp.float32)
                         * (1.0 / np.sqrt(H)))
    labels = jax.random.randint(k_lbl, (B, 1), 0, V, dtype=jnp.int32)

    # 1) forced small tiles (f32 end-to-end): S-tail + V-tail masking + split path.
    loss = jax.block_until_ready(
        swin_cls_forward(hidden_states, classifier_weight, labels, ts=16, tv=256))
    ref = reference_forward(hidden_states, classifier_weight, labels)
    np.testing.assert_allclose(np.asarray(loss), np.asarray(ref),
                               rtol=1e-4, atol=1e-4)

    # 2) auto (VMEM-budgeted) tiling with a bf16 weight stream — the production
    #    configuration; compared against an f32 reference with loose tolerance
    #    (expected mixed-precision difference).
    w_bf16 = classifier_weight.astype(jnp.bfloat16)
    loss_bf16 = jax.block_until_ready(
        swin_cls_forward(hidden_states, w_bf16, labels))
    ref_bf16 = reference_forward(hidden_states, w_bf16.astype(jnp.float32), labels)
    np.testing.assert_allclose(np.asarray(loss_bf16), np.asarray(ref_bf16),
                               rtol=5e-2, atol=5e-2)

    print("KERNEL_OK")
</pallas_src>

<mosaic_0001>
module attributes {stable_mosaic.version = 11 : i64} {
  func.func @_pool_kernel(%arg0: i32, %arg1: memref<16x8x128xf32, #tpu.memory_space<vmem>>, %arg2: memref<8x128xf32, #tpu.memory_space<vmem>>, %arg3: memref<8x128xf32, #tpu.memory_space<vmem>>) attributes {dimension_semantics = [#tpu.dimension_semantics<arbitrary>], iteration_bounds = array<i64: 4>, scalar_prefetch = 0 : i64, scratch_operands = 1 : i64, tpu.core_type = #tpu.core_type<tc>, window_params = [{transform_indices = @transform_0, window_bounds = array<i64: 16, 8, 128>}, {pipeline_mode = #tpu.pipeline_mode<synchronous>, transform_indices = @transform_1, window_bounds = array<i64: 8, 128>}]} {
    %c0_i32 = arith.constant 0 : i32
    %0 = arith.cmpi eq, %arg0, %c0_i32 : i32
    %1 = arith.extui %0 : i1 to i32
    %c0_i32_0 = arith.constant 0 : i32
    %2 = arith.cmpi ne, %1, %c0_i32_0 : i32
    scf.if %2 {
      %cst = arith.constant 0.000000e+00 : f32
      %13 = vector.broadcast %cst : f32 to vector<8x128xf32>
      %c0_8 = arith.constant 0 : index
      %c0_9 = arith.constant 0 : index
      %14 = vector.load %arg3[%c0_8, %c0_9] : memref<8x128xf32, #tpu.memory_space<vmem>>, vector<8x128xf32>
      tpu.vector_store %arg3[%c0_8, %c0_9], %13 {strides = array<i32>} : memref<8x128xf32, #tpu.memory_space<vmem>>, vector<8x128xf32>,
    } else {
    }
    %c0 = arith.constant 0 : index
    %c0_1 = arith.constant 0 : index
    %c0_2 = arith.constant 0 : index
    %3 = vector.load %arg1[%c0, %c0_1, %c0_2] : memref<16x8x128xf32, #tpu.memory_space<vmem>>, vector<16x8x128xf32>
    %c3_i32 = arith.constant 3 : i32
    %4 = arith.cmpi ne, %arg0, %c3_i32 : i32
    %5 = arith.extui %4 : i1 to i32
    %c0_i32_3 = arith.constant 0 : i32
    %6 = arith.cmpi ne, %5, %c0_i32_3 : i32
    scf.if %6 {
      %c0_8 = arith.constant 0 : index
      %c0_9 = arith.constant 0 : index
      %13 = vector.load %arg3[%c0_8, %c0_9] : memref<8x128xf32, #tpu.memory_space<vmem>>, vector<8x128xf32>
      %cst = arith.constant dense<0.000000e+00> : vector<8x128xf32>
      %14 = vector.multi_reduction <add>, %3, %cst [0] : vector<16x8x128xf32> to vector<8x128xf32>
      %15 = arith.addf %13, %14 : vector<8x128xf32>
      %c0_10 = arith.constant 0 : index
      %c0_11 = arith.constant 0 : index
      %16 = vector.load %arg3[%c0_10, %c0_11] : memref<8x128xf32, #tpu.memory_space<vmem>>, vector<8x128xf32>
      tpu.vector_store %arg3[%c0_10, %c0_11], %15 {strides = array<i32>} : memref<8x128xf32, #tpu.memory_space<vmem>>, vector<8x128xf32>,
    } else {
    }
    %c3_i32_4 = arith.constant 3 : i32
    %7 = arith.cmpi eq, %arg0, %c3_i32_4 : i32
    %8 = arith.extui %7 : i1 to i32
    %c0_i32_5 = arith.constant 0 : i32
    %9 = arith.cmpi ne, %8, %c0_i32_5 : i32
    scf.if %9 {
      %13 = tpu.iota {dimensions = array<i32: 0>} : vector<16x8x128xi32>
      %c0_8 = arith.constant 0 : index
      %c0_9 = arith.constant 0 : index
      %14 = vector.load %arg3[%c0_8, %c0_9] : memref<8x128xf32, #tpu.memory_space<vmem>>, vector<8x128xf32>
      %c2_i32 = arith.constant 2 : i32
      %15 = vector.broadcast %c2_i32 : i32 to vector<16x8x128xi32>
      %16 = arith.cmpi slt, %13, %15 : vector<16x8x128xi32>
      %cst = arith.constant 0.000000e+00 : f32
      %17 = vector.broadcast %cst : f32 to vector<16x8x128xf32>
      %18 = arith.select %16, %3, %17 : vector<16x8x128xi1>, vector<16x8x128xf32>
      %cst_10 = arith.constant dense<0.000000e+00> : vector<8x128xf32>
      %19 = vector.multi_reduction <add>, %18, %cst_10 [0] : vector<16x8x128xf32> to vector<8x128xf32>
      %20 = arith.addf %14, %19 : vector<8x128xf32>
      %c0_11 = arith.constant 0 : index
      %c0_12 = arith.constant 0 : index
      %21 = vector.load %arg3[%c0_11, %c0_12] : memref<8x128xf32, #tpu.memory_space<vmem>>, vector<8x128xf32>
      tpu.vector_store %arg3[%c0_11, %c0_12], %20 {strides = array<i32>} : memref<8x128xf32, #tpu.memory_space<vmem>>, vector<8x128xf32>,
    } else {
    }
    %c3_i32_6 = arith.constant 3 : i32
    %10 = arith.cmpi eq, %arg0, %c3_i32_6 : i32
    %11 = arith.extui %10 : i1 to i32
    %c0_i32_7 = arith.constant 0 : i32
    %12 = arith.cmpi ne, %11, %c0_i32_7 : i32
    scf.if %12 {
      %c0_8 = arith.constant 0 : index
      %c0_9 = arith.constant 0 : index
      %13 = vector.load %arg3[%c0_8, %c0_9] : memref<8x128xf32, #tpu.memory_space<vmem>>, vector<8x128xf32>
      %cst = arith.constant 2.000000e-02 : f32
      %14 = vector.broadcast %cst : f32 to vector<8x128xf32>
      %15 = arith.mulf %13, %14 : vector<8x128xf32>
      %c0_10 = arith.constant 0 : index
      %c0_11 = arith.constant 0 : index
      %16 = vector.load %arg2[%c0_10, %c0_11] : memref<8x128xf32, #tpu.memory_space<vmem>>, vector<8x128xf32>
      tpu.vector_store %arg2[%c0_10, %c0_11], %15 {strides = array<i32>} : memref<8x128xf32, #tpu.memory_space<vmem>>, vector<8x128xf32>,
    } else {
    }
    return
  }
  func.func @transform_0(%arg0: i32) -> (i32, i32, i32) {
    %c0_i32 = arith.constant 0 : i32
    %c0_i32_0 = arith.constant 0 : i32
    %c0_i32_1 = arith.constant 0 : i32
    return %arg0, %c0_i32, %c0_i32_0 : i32, i32, i32
  }
  func.func @transform_1(%arg0: i32) -> (i32, i32) {
    %c0_i32 = arith.constant 0 : i32
    %c0_i32_0 = arith.constant 0 : i32
    %c0_i32_1 = arith.constant 0 : i32
    return %c0_i32, %c0_i32_0 : i32, i32
  }
}

</mosaic_0001>

<llo_original>
// kernel: tpu_custom_call.1
$region0: #{tpu_custom_call.1}
  #allocation0 [shape = 'u32[]', space=smem, size = 0x4, offset = 0x4, fixed_abs, tag = 'smem constant byte address 0x4 - core index']
  #allocation1 [shape = 'u32[144,128]{1,0:T(1,128)}', space=vmem, size = 0x12000, scoped, tag = 'internal scratch']
  #allocation2 [shape = 'f32[8,128]{1,0:T(8,128)}', space=vmem, size = 0x1000, scoped, tag = 'scratch operand']
  %s0 = inlined_call_operand.hbm [shape: f32[50,8,128], index: 0, kind: input, shape index: {}]
  %s1 = inlined_call_operand.hbm [shape: f32[8,128], index: 1, kind: output, shape index: {}]
  %s2 = sld [smem:[#allocation0]]
  $region53: #{tpu_custom_call.1} parent=0
    _
  %s4 = ssub.s32 1, %s2
  %s5 = scalar_select 0, %s4, %s2
  $region1: #{tpu_custom_call.1} parent=0
    #allocation3 [shape = 'u8[131072]{0}', space=vmem, size = 0x20000, scoped, tag = 'input window, operand 0']
    #allocation4 [shape = 's32[2]{0}', space=sflag, size = 0x8, scoped, tag = 'scoped memory for tpu_custom_call.1']
    #allocation5 [shape = 's32[2]{0}', space=sflag, size = 0x8, scoped, tag = 'scoped memory for tpu_custom_call.1']
    #allocation6 [shape = 'u8[4096]{0}', space=vmem, size = 0x1000, scoped, tag = 'output window, operand 0, single buffered']
    %6 = vsyncpa [#allocation4], 0
    %s7 = scalar_lea.sflag [#allocation4], 1
    %8 = vsyncpa %s7, 0
    %9 = vsyncpa [#allocation5], 0
    loop: start=0, step=1, limit=6
    $region2: #{tpu_custom_call.1} parent=1 // loop_pre_header
      _
    $region3: #{tpu_custom_call.1} parent=1 // loop_header
      %s11 = sphi 0, %s15
      %p12 = scmp.ge.s32.totalorder %s11, 6
      %s21 = sphi 0, %s23
      %s24 = sphi 0, %s21
      %s25 = sphi 0, %s24
      %s41 = sphi 0, %s25
      %s45 = sphi 0, %s45
      %s47 = sphi 0, %s45
      %s48 = sphi 0, %s47
      %s62 = sphi 0, %s48
    $region4: #{tpu_custom_call.1} parent=1 // loop_header_branch
      %14 = sbr.rel (%p12) target = $region8
    $region5: #{tpu_custom_call.1} parent=1 // loop_body
      %s16 = ssub.s32 %s11, 1
      %s17 = ssub.s32 %s11, 2
      %s18 = sadd.s32 %s11, 1
      %s19 = ssub.s32 %s11, %s18
      %p20 = scmp.eq.s32.totalorder %s19, 0
      %s22 = sadd.s32 %s21, 1
      %s23 = scalar_select %p20, %s21, %s22
      %p26 = pneg %p20
      %p27 = scmp.eq.s32.totalorder %s11, 3
      %p28 = por %p26, %p27
      %p29 = scmp.ne.s32.totalorder %s21, %s24
      %p30 = scmp.eq.s32.totalorder %s11, 0
      %p31 = por %p29, %p30
      %p32 = scmp.ne.s32.totalorder %s21, %s24
      %p33 = scmp.eq.s32.totalorder %s16, 3
      %p34 = por %p32, %p33
      %p35 = scmp.ne.s32.totalorder %s24, %s25
      %p36 = scmp.eq.s32.totalorder %s16, 0
      %p37 = por %p35, %p36
      %p38 = scmp.ne.s32.totalorder %s24, %s25
      %p39 = scmp.eq.s32.totalorder %s17, 3
      %p40 = por %p38, %p39
      %p42 = scmp.ne.s32.totalorder %s25, %s41
      %p43 = scmp.eq.s32.totalorder %s17, 0
      %p44 = por %p42, %p43
      %s46 = sadd.s32 %s45, 1
      %p49 = scmp.eq.s32.totalorder %s11, 3
      %p50 = scmp.ne.s32.totalorder %s45, %s47
      %p51 = scmp.eq.s32.totalorder %s11, 0
      %p52 = por %p50, %p51
      %p53 = scmp.ne.s32.totalorder %s45, %s47
      %p54 = scmp.eq.s32.totalorder %s16, 3
      %p55 = por %p53, %p54
      %p56 = scmp.ne.s32.totalorder %s47, %s48
      %p57 = scmp.eq.s32.totalorder %s16, 0
      %p58 = por %p56, %p57
      %p59 = scmp.ne.s32.totalorder %s47, %s48
      %p60 = scmp.eq.s32.totalorder %s17, 3
      %p61 = por %p59, %p60
      %p63 = scmp.ne.s32.totalorder %s48, %s62
      %p64 = scmp.eq.s32.totalorder %s17, 0
      %p65 = por %p63, %p64
      %p66 = scmp.le.s32.totalorder 1, %s11
      %p67 = scmp.lt.s32.totalorder %s11, 5
      %p68 = pnand %p66, %p67
      %p69 = pneg %p68
      // Predicated region
      $region9: #{tpu_custom_call.1} parent=5 // pred_check
        _
      $region10: #{tpu_custom_call.1} parent=5 // pred_check_branch
        %71 = sbr.rel (%p68) target = $region12
      $region11: #{tpu_custom_call.1} parent=5 // pred_region
        %s72 = ssub.s32 %s11, 1
      $region12: #{tpu_custom_call.1} parent=5 // pred_fallthru
        _
      %p73 = scmp.lt.s32.totalorder %s11, 4
      // Predicated region
      $region13: #{tpu_custom_call.1} parent=5 // pred_check
        %p74 = pneg %p73
      $region14: #{tpu_custom_call.1} parent=5 // pred_check_branch
        %76 = sbr.rel (%p74) target = $region16
      $region15: #{tpu_custom_call.1} parent=5 // pred_region
        // Predicated region
        $region17: #{tpu_custom_call.1} parent=15 // pred_check
          %p77 = pneg %p31
        $region18: #{tpu_custom_call.1} parent=15 // pred_check_branch
          %79 = sbr.rel (%p77) target = $region20
        $region19: #{tpu_custom_call.1} parent=15 // pred_region
          %s80 = sand.u32 %s21, 1
          %s81 = scalar_lea.sflag [#allocation4], %s80
          %s82 = sand.u32 %s21, 1
          %s83 = smul.addr %s82, 128
          %s84 = scalar_lea.vmem [#allocation3], %s83
          %s85 = smul.u32 16, %s11
          %s86 = ssub.s32 50, %s85
          %p87 = scmp.lt.s32.totalorder %s86, 16
          %s88 = scalar_select %p87, %s86, 16
          %s89 = smul.u32 128, %s88
          %s91 = ssub.s32 2048, %s89
          %92 = vsyncadd %s81, %s91
          %p93 = scmp.ne.s32.totalorder 0, %s89
          %s94 = smul.addr %s85, 128
          %s95 = scalar_lea.hbm %s0, %s94
          %s96 = smul.u32 8, %s88
          %s97 = sshll.u32 %s84, 4
          %s98 = int_to_ptr.vmem [resolvable:$true] %s97
          %s99 = sshll.u32 %s96, 4
          %103 = dma.hbm_to_vmem [thread:$0]  (%p93), %s95, %s99, %s98, %s81, 128, 128, 8
        $region20: #{tpu_custom_call.1} parent=15 // pred_fallthru
          _
      $region16: #{tpu_custom_call.1} parent=5 // pred_fallthru
        _
      %p104 = scmp.le.s32.totalorder 1, %s11
      %p105 = scmp.lt.s32.totalorder %s11, 5
      %p106 = pnand %p104, %p105
      %p107 = pneg %p106
      // Predicated region
      $region21: #{tpu_custom_call.1} parent=5 // pred_check
        _
      $region22: #{tpu_custom_call.1} parent=5 // pred_check_branch
        %109 = sbr.rel (%p106) target = $region24
      $region23: #{tpu_custom_call.1} parent=5 // pred_region
        %s110 = ssub.s32 %s11, 1
        %s111 = sand.u32 %s24, 1
        %s112 = scalar_lea.sflag [#allocation4], %s111
        %s113 = sand.u32 %s24, 1
        %s114 = smul.addr %s113, 128
        %s115 = scalar_lea.vmem [#allocation3], %s114
        // Predicated region
        $region25: #{tpu_custom_call.1} parent=23 // pred_check
          %p116 = pneg %p37
        $region26: #{tpu_custom_call.1} parent=23 // pred_check_branch
          %118 = sbr.rel (%p116) target = $region28
        $region27: #{tpu_custom_call.1} parent=23 // pred_region
          %119 = dma.done %s112, 2048
        $region28: #{tpu_custom_call.1} parent=23 // pred_fallthru
          _
        %s120 = sand.u32 %s24, 1
        %s121 = scalar_lea.sflag [#allocation4], %s120
        %s122 = sand.u32 %s24, 1
        %s123 = smul.addr %s122, 128
        %s124 = scalar_lea.vmem [#allocation3], %s123
        %p125 = pneg %p37
        %p126 = pneg %p34
        %p127 = pneg %p58
        %p128 = pneg %p55
        %s129 = smul.u32 16, %s16
        %s130 = ssub.s32 50, %s129
        %p131 = scmp.lt.s32.totalorder %s130, 16
        %s132 = scalar_select %p131, %s130, 16
        %s133 = smul.u32 128, %s132
        %p134 = scmp.eq.s32.totalorder %s16, 0
        // Predicated region
        $region29: #{tpu_custom_call.1} parent=23 // pred_check
          %p135 = pneg %p134
        $region30: #{tpu_custom_call.1} parent=23 // pred_check_branch
          %137 = sbr.rel (%p135) target = $region32
        $region31: #{tpu_custom_call.1} parent=23 // pred_region
          %138 = vst [vmem:[#allocation2] sm:$0xff] 0.0
        $region32: #{tpu_custom_call.1} parent=23 // pred_fallthru
          _
        %v139 = vld [vmem:[%s115] sm:$0xff]
        %v140 = vld [vmem:[%s115 + $0x8] sm:$0xff]
        %v141 = vld [vmem:[%s115 + $0x10] sm:$0xff]
        %v142 = vld [vmem:[%s115 + $0x18] sm:$0xff]
        %v143 = vld [vmem:[%s115 + $0x20] sm:$0xff]
        %v144 = vld [vmem:[%s115 + $0x28] sm:$0xff]
        %v145 = vld [vmem:[%s115 + $0x30] sm:$0xff]
        %v146 = vld [vmem:[%s115 + $0x38] sm:$0xff]
        %v147 = vld [vmem:[%s115 + $0x40] sm:$0xff]
        %v148 = vld [vmem:[%s115 + $0x48] sm:$0xff]
        %v149 = vld [vmem:[%s115 + $0x50] sm:$0xff]
        %v150 = vld [vmem:[%s115 + $0x58] sm:$0xff]
        %v151 = vld [vmem:[%s115 + $0x60] sm:$0xff]
        %v152 = vld [vmem:[%s115 + $0x68] sm:$0xff]
        %v153 = vld [vmem:[%s115 + $0x70] sm:$0xff]
        %v154 = vld [vmem:[%s115 + $0x78] sm:$0xff]
        %p155 = scmp.ne.s32.totalorder %s16, 3
        // Predicated region
        $region33: #{tpu_custom_call.1} parent=23 // pred_check
          %p156 = pneg %p155
        $region34: #{tpu_custom_call.1} parent=23 // pred_check_branch
          %158 = sbr.rel (%p156) target = $region36
        $region35: #{tpu_custom_call.1} parent=23 // pred_region
          %v159 = vld [vmem:[#allocation2] sm:$0xff]
          %v160 = vadd.f32 %v139, %v140
          %v161 = vadd.f32 %v160, %v141
          %v162 = vadd.f32 %v161, %v142
          %v163 = vadd.f32 %v162, %v143
          %v164 = vadd.f32 %v163, %v144
          %v165 = vadd.f32 %v164, %v145
          %v166 = vadd.f32 %v165, %v146
          %v167 = vadd.f32 %v166, %v147
          %v168 = vadd.f32 %v167, %v148
          %v169 = vadd.f32 %v168, %v149
          %v170 = vadd.f32 %v169, %v150
          %v171 = vadd.f32 %v170, %v151
          %v172 = vadd.f32 %v171, %v152
          %v173 = vadd.f32 %v172, %v153
          %v174 = vadd.f32 %v173, %v154
          %v175 = vadd.f32 %v159, %v174
          %176 = vst [vmem:[#allocation2] sm:$0xff] %v175
        $region36: #{tpu_custom_call.1} parent=23 // pred_fallthru
          _
        %p177 = scmp.eq.s32.totalorder %s16, 3
        // Predicated region
        $region37: #{tpu_custom_call.1} parent=23 // pred_check
          %p178 = pneg %p177
        $region38: #{tpu_custom_call.1} parent=23 // pred_check_branch
          %180 = sbr.rel (%p178) target = $region40
        $region39: #{tpu_custom_call.1} parent=23 // pred_region
          %v181 = vld [vmem:[#allocation2] sm:$0xff]
          %v182 = vsel 1, %v139, 0.0
          %v183 = vsel 1, %v140, 0.0
          %v184 = vsel 0, %v141, 0.0
          %v185 = vsel 0, %v142, 0.0
          %v186 = vsel 0, %v143, 0.0
          %v187 = vsel 0, %v144, 0.0
          %v188 = vsel 0, %v145, 0.0
          %v189 = vsel 0, %v146, 0.0
          %v190 = vsel 0, %v147, 0.0
          %v191 = vsel 0, %v148, 0.0
          %v192 = vsel 0, %v149, 0.0
          %v193 = vsel 0, %v150, 0.0
          %v194 = vsel 0, %v151, 0.0
          %v195 = vsel 0, %v152, 0.0
          %v196 = vsel 0, %v153, 0.0
          %v197 = vsel 0, %v154, 0.0
          %v198 = vadd.f32 %v182, %v183
          %v199 = vadd.f32 %v198, %v184
          %v200 = vadd.f32 %v199, %v185
          %v201 = vadd.f32 %v200, %v186
          %v202 = vadd.f32 %v201, %v187
          %v203 = vadd.f32 %v202, %v188
          %v204 = vadd.f32 %v203, %v189
          %v205 = vadd.f32 %v204, %v190
          %v206 = vadd.f32 %v205, %v191
          %v207 = vadd.f32 %v206, %v192
          %v208 = vadd.f32 %v207, %v193
          %v209 = vadd.f32 %v208, %v194
          %v210 = vadd.f32 %v209, %v195
          %v211 = vadd.f32 %v210, %v196
          %v212 = vadd.f32 %v211, %v197
          %v213 = vadd.f32 %v181, %v212
          %214 = vst [vmem:[#allocation2] sm:$0xff] %v213
          %v215 = vld [vmem:[#allocation2] sm:$0xff]
          %v216 = vmul.f32 %v215, 0.02
          %217 = vst [vmem:[#allocation6] sm:$0xff] %v216
        $region40: #{tpu_custom_call.1} parent=23 // pred_fallthru
          _
        // Predicated region
        $region41: #{tpu_custom_call.1} parent=23 // pred_check
          %p218 = pneg %p55
        $region42: #{tpu_custom_call.1} parent=23 // pred_check_branch
          %220 = sbr.rel (%p218) target = $region44
        $region43: #{tpu_custom_call.1} parent=23 // pred_region
          %s222 = ssub.s32 128, 128
          %223 = vsyncadd [#allocation5], %s222
          %s225 = sshll.u32 [#allocation6], 4
          %s226 = int_to_ptr.vmem [resolvable:$true] %s225
          %228 = dma.vmem_to_hbm [thread:$0]  %s226, 128, %s1, [#allocation5]
        $region44: #{tpu_custom_call.1} parent=23 // pred_fallthru
          _
        // Predicated region
        $region45: #{tpu_custom_call.1} parent=23 // pred_check
          %p229 = pneg %p55
        $region46: #{tpu_custom_call.1} parent=23 // pred_check_branch
          %231 = sbr.rel (%p229) target = $region48
        $region47: #{tpu_custom_call.1} parent=23 // pred_region
          %232 = dma.done [#allocation5], 128
        $region48: #{tpu_custom_call.1} parent=23 // pred_fallthru
          _
      $region24: #{tpu_custom_call.1} parent=5 // pred_fallthru
        _
      %p233 = scmp.le.s32.totalorder 2, %s11
      // Predicated region
      $region49: #{tpu_custom_call.1} parent=5 // pred_check
        %p234 = pneg %p233
      $region50: #{tpu_custom_call.1} parent=5 // pred_check_branch
        %236 = sbr.rel (%p234) target = $region52
      $region51: #{tpu_custom_call.1} parent=5 // pred_region
        %s237 = ssub.s32 %s11, 2
      $region52: #{tpu_custom_call.1} parent=5 // pred_fallthru
        _
    $region6: #{tpu_custom_call.1} parent=1 // loop_footer
      %s15 = sadd.s32 1, %s11
    $region7: #{tpu_custom_call.1} parent=1 // loop_footer_branch
      %10 = sbr.rel target = $region3
    $region8: #{tpu_custom_call.1} parent=1 // loop_exit
      _
    %238 = vsyncpa [#allocation4], 1
    %s239 = scalar_lea.sflag [#allocation4], 1
    %240 = vsyncpa %s239, 1
    %241 = vsyncpa [#allocation5], 1
    %s242 = scalar_lea.sflag [#allocation5], 1
    %243 = vsyncpa %s242, 1

</llo_original>
